<compile_context>
chip_gen: v5e
topology: v5e:2x2
jax: 0.10.0
libtpu: 0.0.40
codegen_flags: <defaults>
</compile_context>

<pallas_src>
import functools

import jax
import jax.numpy as jnp
from jax.experimental import pallas as pl
from jax.experimental.pallas import tpu as pltpu


def _round_up(n, m):
    return ((n + m - 1) // m) * m


def _cdiv(a, b):
    return (a + b - 1) // b


def _tom_kernel(x_ref, sm_ref, w1_ref, b1_ref, w2_ref, b2_ref, out_ref,
                *, hidden_dim, n_groups, n_actions):
    """Fused two-head MLP + grouped softmax.

    x_ref, sm_ref : [TILE_B, H]
    w1_ref        : [2H, 2H]      (Wa1 | Ws1), row-split inside the kernel
    b1_ref        : [1, 2H]       (ba1 | bs1)
    w2_ref        : [2H, OUT_pad] block-diagonal (Wa2 ; Ws2), zero-padded
    b2_ref        : [1, OUT_pad]
    out_ref       : [TILE_B, OUT_pad] = [softmax(action logits) | states | 0-pad]
    """
    H = hidden_dim

    # Layer 1: the x|social_memory "concat" is replaced by two MXU dots against
    # the row-halves of the fused W1 (static sublane slices; no lane relayout).
    hx = jnp.dot(x_ref[...], w1_ref[pl.ds(0, H), :],
                 preferred_element_type=jnp.float32)
    hm = jnp.dot(sm_ref[...], w1_ref[pl.ds(H, H), :],
                 preferred_element_type=jnp.float32)
    h = jnp.maximum(hx + hm + b1_ref[...], 0.0)                      # [TB, 2H]

    # Layer 2: block-diagonal fused weight -> [action logits | states | 0-pad].
    out = jnp.dot(h, w2_ref[...], preferred_element_type=jnp.float32)
    out = out + b2_ref[...]                                          # [TB, OUT_pad]

    # One unmasked, lane-dense store of the whole 128-lane result slab ...
    out_ref[...] = out

    # ... then the grouped softmax is written back over the first A*n_actions
    # lanes with small masked stores.  Per-group max + exact f32 divide so the
    # probabilities are robust and sum to 1 to f32 precision.
    for g in range(n_groups):          # n_groups = n_agents - 1 (tiny, unrolled)
        lo = g * n_actions
        lg = out[:, lo:lo + n_actions]                               # [TB, n_actions]
        mg = jnp.max(lg, axis=-1, keepdims=True)
        eg = jnp.exp(lg - mg)
        out_ref[:, lo:lo + n_actions] = eg / jnp.sum(eg, axis=-1, keepdims=True)


def pack_tom_params(params, *, hidden_dim, n_agents, n_actions):
    """One-time fusion of the 8 raw Linear params into 4 kernel operands.

    Call once at init / parameter-load time, NOT per forward call.
    Weights are expected in [in, out] layout (PyTorch weights transposed).
    """
    H = hidden_dim
    A = n_agents - 1
    AN = A * n_actions
    AH = A * H
    OUT_PAD = _round_up(AN + AH, 128)

    wa1, ba1, wa2, ba2, ws1, bs1, ws2, bs2 = params
    w1f = jnp.concatenate([wa1, ws1], axis=1)                  # [2H, 2H]
    b1f = jnp.concatenate([ba1, bs1], axis=1)                  # [1, 2H]
    w2f = jnp.zeros((2 * H, OUT_PAD), jnp.float32)
    w2f = w2f.at[:H, :AN].set(wa2)                             # action head block
    w2f = w2f.at[H:, AN:AN + AH].set(ws2)                      # state head block
    b2f = jnp.zeros((1, OUT_PAD), jnp.float32)
    b2f = b2f.at[:, :AN].set(ba2).at[:, AN:AN + AH].set(bs2)
    return (w1f, b1f, w2f, b2f)


@functools.partial(jax.jit, static_argnames=("hidden_dim", "n_agents", "n_actions"))
def theory_of_mind_forward(x, social_memory, packed_params, *, hidden_dim,
                           n_agents, n_actions):
    """x, social_memory: [B, hidden_dim] float32.  packed_params: pack_tom_params output."""
    B, H = x.shape
    assert H == hidden_dim
    A = n_agents - 1
    AN = A * n_actions
    AH = A * hidden_dim
    OUT_PAD = _round_up(AN + AH, 128)

    w1f, b1f, w2f, b2f = packed_params

    # Batch tiling: large tiles (amortize ~0.35 us/step grid overhead) but sized
    # so big batches get >= 2 grid steps, letting the "parallel" axis shard
    # across v7x's two TensorCores.  Per-step VMEM stays tiny (< 1 MiB at 512).
    TILE_B = max(8, min(512, _round_up(_cdiv(B, 2), 8)))
    B_pad = _round_up(B, TILE_B)
    if B_pad != B:
        pad = ((0, B_pad - B), (0, 0))
        xp = jnp.pad(x, pad)
        smp = jnp.pad(social_memory, pad)
    else:
        xp, smp = x, social_memory

    grid = (B_pad // TILE_B,)
    rep = lambda shape: pl.BlockSpec(shape, lambda i: (0, 0))   # replicated weights

    out_full = pl.pallas_call(
        functools.partial(_tom_kernel, hidden_dim=hidden_dim, n_groups=A,
                          n_actions=n_actions),
        out_shape=jax.ShapeDtypeStruct((B_pad, OUT_PAD), jnp.float32),
        grid=grid,
        in_specs=[
            pl.BlockSpec((TILE_B, H), lambda i: (i, 0)),        # x
            pl.BlockSpec((TILE_B, H), lambda i: (i, 0)),        # social_memory
            rep((2 * H, 2 * H)),                                # fused W1
            rep((1, 2 * H)),                                    # fused b1
            rep((2 * H, OUT_PAD)),                              # fused W2 (blockdiag)
            rep((1, OUT_PAD)),                                  # fused b2
        ],
        out_specs=pl.BlockSpec((TILE_B, OUT_PAD), lambda i: (i, 0)),
        compiler_params=pltpu.CompilerParams(
            dimension_semantics=("parallel",)),   # megacore-shardable batch axis
    )(xp, smp, w1f, b1f, w2f, b2f)

    out_flat = out_full[:B]
    predicted_actions = out_flat[:, :AN].reshape(B, A, n_actions)
    predicted_states = out_flat[:, AN:AN + AH].reshape(B, A, hidden_dim)
    return predicted_actions, predicted_states


def init_params(key, hidden_dim, n_agents, n_actions):
    """PyTorch-Linear-style uniform init; weights stored as [in, out]."""
    A = n_agents - 1
    keys = jax.random.split(key, 8)

    def lin(kw, kb, fan_in, fan_out):
        bound = 1.0 / jnp.sqrt(fan_in)
        w = jax.random.uniform(kw, (fan_in, fan_out), jnp.float32, -bound, bound)
        b = jax.random.uniform(kb, (1, fan_out), jnp.float32, -bound, bound)
        return w, b

    wa1, ba1 = lin(keys[0], keys[1], 2 * hidden_dim, hidden_dim)
    wa2, ba2 = lin(keys[2], keys[3], hidden_dim, n_actions * A)
    ws1, bs1 = lin(keys[4], keys[5], 2 * hidden_dim, hidden_dim)
    ws2, bs2 = lin(keys[6], keys[7], hidden_dim, hidden_dim * A)
    return (wa1, ba1, wa2, ba2, ws1, bs1, ws2, bs2)


if __name__ == "__main__":
    batch = 2
    input_dim = 32        # unused in forward (matches the PyTorch module)
    hidden_dim = 32
    n_agents = 3
    n_actions = 4

    key = jax.random.PRNGKey(0)
    kx, ksm, kp = jax.random.split(key, 3)

    x = jax.random.normal(kx, (batch, hidden_dim), jnp.float32)
    social_memory = jax.random.normal(ksm, (batch, hidden_dim), jnp.float32)
    params = init_params(kp, hidden_dim, n_agents, n_actions)

    # Pack/fuse the weights ONCE (outside the hot path).
    packed = pack_tom_params(params, hidden_dim=hidden_dim, n_agents=n_agents,
                             n_actions=n_actions)

    predicted_actions, predicted_states = theory_of_mind_forward(
        x, social_memory, packed,
        hidden_dim=hidden_dim, n_agents=n_agents, n_actions=n_actions)
    jax.block_until_ready((predicted_actions, predicted_states))

    assert predicted_actions.shape == (batch, n_agents - 1, n_actions)
    assert predicted_states.shape == (batch, n_agents - 1, hidden_dim)

    # Reference in plain JAX (raw, un-fused params).
    wa1, ba1, wa2, ba2, ws1, bs1, ws2, bs2 = params
    comb = jnp.concatenate([x, social_memory], axis=1)
    ref_logits = jnp.maximum(comb @ wa1 + ba1, 0.0) @ wa2 + ba2
    ref_actions = jax.nn.softmax(
        ref_logits.reshape(batch, n_agents - 1, n_actions), axis=2)
    ref_states = (jnp.maximum(comb @ ws1 + bs1, 0.0) @ ws2 + bs2).reshape(
        batch, n_agents - 1, hidden_dim)

    assert jnp.allclose(predicted_actions, ref_actions, atol=2e-3), \
        float(jnp.max(jnp.abs(predicted_actions - ref_actions)))
    assert jnp.allclose(predicted_states, ref_states, atol=2e-3), \
        float(jnp.max(jnp.abs(predicted_states - ref_states)))
    # Exact divide => probabilities sum to 1 to f32 precision per agent.
    assert jnp.allclose(predicted_actions.sum(-1), 1.0, atol=1e-5), \
        float(jnp.max(jnp.abs(predicted_actions.sum(-1) - 1.0)))

    print("KERNEL_OK")
</pallas_src>

<mosaic_0001>
module attributes {stable_mosaic.version = 11 : i64} {
  func.func @_tom_kernel(%arg0: i32, %arg1: memref<8x32xf32, #tpu.memory_space<vmem>>, %arg2: memref<8x32xf32, #tpu.memory_space<vmem>>, %arg3: memref<64x64xf32, #tpu.memory_space<vmem>>, %arg4: memref<1x64xf32, #tpu.memory_space<vmem>>, %arg5: memref<64x128xf32, #tpu.memory_space<vmem>>, %arg6: memref<1x128xf32, #tpu.memory_space<vmem>>, %arg7: memref<8x128xf32, #tpu.memory_space<vmem>>) attributes {dimension_semantics = [#tpu.dimension_semantics<parallel>], iteration_bounds = array<i64: 1>, scalar_prefetch = 0 : i64, scratch_operands = 0 : i64, tpu.core_type = #tpu.core_type<tc>, window_params = [{transform_indices = @transform_0, window_bounds = array<i64: 8, 32>}, {transform_indices = @transform_1, window_bounds = array<i64: 8, 32>}, {pipeline_mode = #tpu.pipeline_mode<synchronous>, transform_indices = @transform_2, window_bounds = array<i64: 64, 64>}, {pipeline_mode = #tpu.pipeline_mode<synchronous>, transform_indices = @transform_3, window_bounds = array<i64: 1, 64>}, {pipeline_mode = #tpu.pipeline_mode<synchronous>, transform_indices = @transform_4, window_bounds = array<i64: 64, 128>}, {pipeline_mode = #tpu.pipeline_mode<synchronous>, transform_indices = @transform_5, window_bounds = array<i64: 1, 128>}, {transform_indices = @transform_6, window_bounds = array<i64: 8, 128>}]} {
    %c0 = arith.constant 0 : index
    %c0_0 = arith.constant 0 : index
    %0 = vector.load %arg1[%c0, %c0_0] : memref<8x32xf32, #tpu.memory_space<vmem>>, vector<8x32xf32>
    %c0_1 = arith.constant 0 : index
    %c0_2 = arith.constant 0 : index
    %1 = vector.load %arg3[%c0_1, %c0_2] : memref<64x64xf32, #tpu.memory_space<vmem>>, vector<32x64xf32>
    %cst = arith.constant dense<0.000000e+00> : vector<8x64xf32>
    %2 = tpu.matmul %0, %1, %cst {dimension_numbers = #tpu.dot_dimension_numbers<[1], [0], [0], [1], [0, 0, 1, 1], [], []>} : vector<8x32xf32>, vector<32x64xf32>, vector<8x64xf32> -> vector<8x64xf32>
    %c0_3 = arith.constant 0 : index
    %c0_4 = arith.constant 0 : index
    %3 = vector.load %arg2[%c0_3, %c0_4] : memref<8x32xf32, #tpu.memory_space<vmem>>, vector<8x32xf32>
    %c32 = arith.constant 32 : index
    %c0_5 = arith.constant 0 : index
    %4 = vector.load %arg3[%c32, %c0_5] : memref<64x64xf32, #tpu.memory_space<vmem>>, vector<32x64xf32>
    %cst_6 = arith.constant dense<0.000000e+00> : vector<8x64xf32>
    %5 = tpu.matmul %3, %4, %cst_6 {dimension_numbers = #tpu.dot_dimension_numbers<[1], [0], [0], [1], [0, 0, 1, 1], [], []>} : vector<8x32xf32>, vector<32x64xf32>, vector<8x64xf32> -> vector<8x64xf32>
    %6 = arith.addf %2, %5 : vector<8x64xf32>
    %c0_7 = arith.constant 0 : index
    %c0_8 = arith.constant 0 : index
    %7 = vector.load %arg4[%c0_7, %c0_8] : memref<1x64xf32, #tpu.memory_space<vmem>>, vector<1x64xf32>
    %8 = vector.broadcast %7 : vector<1x64xf32> to vector<8x64xf32>
    %9 = arith.addf %6, %8 : vector<8x64xf32>
    %cst_9 = arith.constant 0.000000e+00 : f32
    %10 = vector.broadcast %cst_9 : f32 to vector<8x64xf32>
    %11 = arith.maximumf %9, %10 : vector<8x64xf32>
    %c0_10 = arith.constant 0 : index
    %c0_11 = arith.constant 0 : index
    %12 = vector.load %arg5[%c0_10, %c0_11] : memref<64x128xf32, #tpu.memory_space<vmem>>, vector<64x128xf32>
    %cst_12 = arith.constant dense<0.000000e+00> : vector<8x128xf32>
    %13 = tpu.matmul %11, %12, %cst_12 {dimension_numbers = #tpu.dot_dimension_numbers<[1], [0], [0], [1], [0, 0, 1, 1], [], []>} : vector<8x64xf32>, vector<64x128xf32>, vector<8x128xf32> -> vector<8x128xf32>
    %c0_13 = arith.constant 0 : index
    %c0_14 = arith.constant 0 : index
    %14 = vector.load %arg6[%c0_13, %c0_14] : memref<1x128xf32, #tpu.memory_space<vmem>>, vector<1x128xf32>
    %15 = vector.broadcast %14 : vector<1x128xf32> to vector<8x128xf32>
    %16 = arith.addf %13, %15 : vector<8x128xf32>
    %c0_15 = arith.constant 0 : index
    %c0_16 = arith.constant 0 : index
    %17 = vector.load %arg7[%c0_15, %c0_16] : memref<8x128xf32, #tpu.memory_space<vmem>>, vector<8x128xf32>
    tpu.vector_store %arg7[%c0_15, %c0_16], %16 {strides = array<i32>} : memref<8x128xf32, #tpu.memory_space<vmem>>, vector<8x128xf32>,
    %18 = vector.extract_strided_slice %16 {offsets = [0, 0], sizes = [8, 4], strides = [1, 1]} : vector<8x128xf32> to vector<8x4xf32>
    %cst_17 = arith.constant dense<0xFF800000> : vector<8xf32>
    %19 = vector.multi_reduction <maximumf>, %18, %cst_17 [1] : vector<8x4xf32> to vector<8xf32>
    %20 = vector.shape_cast %19 : vector<8xf32> to vector<8x1xf32>
    %21 = vector.broadcast %20 : vector<8x1xf32> to vector<8x4xf32>
    %22 = arith.subf %18, %21 : vector<8x4xf32>
    %23 = math.exp %22 : vector<8x4xf32>
    %cst_18 = arith.constant dense<0.000000e+00> : vector<8xf32>
    %24 = vector.multi_reduction <add>, %23, %cst_18 [1] : vector<8x4xf32> to vector<8xf32>
    %25 = vector.shape_cast %24 : vector<8xf32> to vector<8x1xf32>
    %26 = vector.broadcast %25 : vector<8x1xf32> to vector<8x4xf32>
    %27 = arith.divf %23, %26 : vector<8x4xf32>
    %c0_19 = arith.constant 0 : index
    %c0_20 = arith.constant 0 : index
    %28 = vector.load %arg7[%c0_19, %c0_20] : memref<8x128xf32, #tpu.memory_space<vmem>>, vector<8x4xf32>
    tpu.vector_store %arg7[%c0_19, %c0_20], %27 {strides = array<i32>} : memref<8x128xf32, #tpu.memory_space<vmem>>, vector<8x4xf32>,
    %29 = vector.extract_strided_slice %16 {offsets = [0, 4], sizes = [8, 4], strides = [1, 1]} : vector<8x128xf32> to vector<8x4xf32>
    %cst_21 = arith.constant dense<0xFF800000> : vector<8xf32>
    %30 = vector.multi_reduction <maximumf>, %29, %cst_21 [1] : vector<8x4xf32> to vector<8xf32>
    %31 = vector.shape_cast %30 : vector<8xf32> to vector<8x1xf32>
    %32 = vector.broadcast %31 : vector<8x1xf32> to vector<8x4xf32>
    %33 = arith.subf %29, %32 : vector<8x4xf32>
    %34 = math.exp %33 : vector<8x4xf32>
    %cst_22 = arith.constant dense<0.000000e+00> : vector<8xf32>
    %35 = vector.multi_reduction <add>, %34, %cst_22 [1] : vector<8x4xf32> to vector<8xf32>
    %36 = vector.shape_cast %35 : vector<8xf32> to vector<8x1xf32>
    %37 = vector.broadcast %36 : vector<8x1xf32> to vector<8x4xf32>
    %38 = arith.divf %34, %37 : vector<8x4xf32>
    %c0_23 = arith.constant 0 : index
    %c4 = arith.constant 4 : index
    %39 = vector.load %arg7[%c0_23, %c4] : memref<8x128xf32, #tpu.memory_space<vmem>>, vector<8x4xf32>
    tpu.vector_store %arg7[%c0_23, %c4], %38 {strides = array<i32>} : memref<8x128xf32, #tpu.memory_space<vmem>>, vector<8x4xf32>,
    return
  }
  func.func @transform_0(%arg0: i32) -> (i32, i32) {
    %c0_i32 = arith.constant 0 : i32
    %c0_i32_0 = arith.constant 0 : i32
    return %arg0, %c0_i32 : i32, i32
  }
  func.func @transform_1(%arg0: i32) -> (i32, i32) {
    %c0_i32 = arith.constant 0 : i32
    %c0_i32_0 = arith.constant 0 : i32
    return %arg0, %c0_i32 : i32, i32
  }
  func.func @transform_2(%arg0: i32) -> (i32, i32) {
    %c0_i32 = arith.constant 0 : i32
    %c0_i32_0 = arith.constant 0 : i32
    %c0_i32_1 = arith.constant 0 : i32
    return %c0_i32, %c0_i32_0 : i32, i32
  }
  func.func @transform_3(%arg0: i32) -> (i32, i32) {
    %c0_i32 = arith.constant 0 : i32
    %c0_i32_0 = arith.constant 0 : i32
    %c0_i32_1 = arith.constant 0 : i32
    return %c0_i32, %c0_i32_0 : i32, i32
  }
  func.func @transform_4(%arg0: i32) -> (i32, i32) {
    %c0_i32 = arith.constant 0 : i32
    %c0_i32_0 = arith.constant 0 : i32
    %c0_i32_1 = arith.constant 0 : i32
    return %c0_i32, %c0_i32_0 : i32, i32
  }
  func.func @transform_5(%arg0: i32) -> (i32, i32) {
    %c0_i32 = arith.constant 0 : i32
    %c0_i32_0 = arith.constant 0 : i32
    %c0_i32_1 = arith.constant 0 : i32
    return %c0_i32, %c0_i32_0 : i32, i32
  }
  func.func @transform_6(%arg0: i32) -> (i32, i32) {
    %c0_i32 = arith.constant 0 : i32
    %c0_i32_0 = arith.constant 0 : i32
    return %arg0, %c0_i32 : i32, i32
  }
}

</mosaic_0001>

<llo_original>
// kernel: theory_of_mind_forward.1
$region0: #{theory_of_mind_forward.1}
  #allocation0 [shape = 'u32[]', space=smem, size = 0x4, offset = 0x4, fixed_abs, tag = 'smem constant byte address 0x4 - core index']
  #allocation1 [shape = 'u32[72,128]{1,0:T(1,128)}', space=vmem, size = 0x9000, scoped, tag = 'internal scratch']
  %s0 = inlined_call_operand.vmem [shape: f32[8,32], index: 0, kind: input, shape index: {}]
  %s1 = inlined_call_operand.vmem [shape: f32[8,32], index: 1, kind: input, shape index: {}]
  %s2 = inlined_call_operand.hbm [shape: f32[64,64], index: 2, kind: input, shape index: {}]
  %s3 = inlined_call_operand.vmem [shape: f32[1,64], index: 3, kind: input, shape index: {}]
  %s4 = inlined_call_operand.hbm [shape: f32[64,128], index: 4, kind: input, shape index: {}]
  %s5 = inlined_call_operand.vmem [shape: f32[1,128], index: 5, kind: input, shape index: {}]
  %s6 = inlined_call_operand.vmem [shape: f32[8,128], index: 6, kind: output, shape index: {}]
  %s7 = sld [smem:[#allocation0]]
  $region42: #{theory_of_mind_forward.1} parent=0
    _
  %s9 = ssub.s32 1, %s7
  %s10 = scalar_select 0, %s9, %s7
  $region1: #{theory_of_mind_forward.1} parent=0
    #allocation2 [shape = 'u8[32768]{0}', space=vmem, size = 0x8000, scoped, tag = 'input window, operand 2, single buffered']
    #allocation3 [shape = 's32[1]{0}', space=sflag, size = 0x4, scoped, tag = 'scoped memory for theory_of_mind_forward.1']
    #allocation4 [shape = 'u8[32768]{0}', space=vmem, size = 0x8000, scoped, tag = 'input window, operand 4, single buffered']
    #allocation5 [shape = 's32[1]{0}', space=sflag, size = 0x4, scoped, tag = 'scoped memory for theory_of_mind_forward.1']
    %11 = vsyncpa [#allocation3], 0
    %12 = vsyncpa [#allocation5], 0
    // Predicated region
    $region2: #{theory_of_mind_forward.1} parent=1 // pred_check
      _
    $region3: #{theory_of_mind_forward.1} parent=1 // pred_check_branch
      %14 = sbr.rel (0) target = $region5
    $region4: #{theory_of_mind_forward.1} parent=1 // pred_region
      _
    $region5: #{theory_of_mind_forward.1} parent=1 // pred_fallthru
      _
    // Predicated region
    $region6: #{theory_of_mind_forward.1} parent=1 // pred_check
      _
    $region7: #{theory_of_mind_forward.1} parent=1 // pred_check_branch
      %16 = sbr.rel (0) target = $region9
    $region8: #{theory_of_mind_forward.1} parent=1 // pred_region
      _
    $region9: #{theory_of_mind_forward.1} parent=1 // pred_fallthru
      _
    // Predicated region
    $region10: #{theory_of_mind_forward.1} parent=1 // pred_check
      _
    $region11: #{theory_of_mind_forward.1} parent=1 // pred_check_branch
      %18 = sbr.rel (0) target = $region13
    $region12: #{theory_of_mind_forward.1} parent=1 // pred_region
      %20 = vsyncadd [#allocation3], 0
      %s21 = sshll.u32 %s2, 4
      %s22 = int_to_ptr.hbm [resolvable:$true] %s21
      %s23 = sshll.u32 [#allocation2], 4
      %s24 = int_to_ptr.vmem [resolvable:$true] %s23
      %29 = dma.hbm_to_vmem [thread:$0]  %s22, 1024, %s24, [#allocation3], 128, 128, 8
    $region13: #{theory_of_mind_forward.1} parent=1 // pred_fallthru
      _
    // Predicated region
    $region14: #{theory_of_mind_forward.1} parent=1 // pred_check
      _
    $region15: #{theory_of_mind_forward.1} parent=1 // pred_check_branch
      %31 = sbr.rel (0) target = $region17
    $region16: #{theory_of_mind_forward.1} parent=1 // pred_region
      _
    $region17: #{theory_of_mind_forward.1} parent=1 // pred_fallthru
      _
    // Predicated region
    $region18: #{theory_of_mind_forward.1} parent=1 // pred_check
      _
    $region19: #{theory_of_mind_forward.1} parent=1 // pred_check_branch
      %33 = sbr.rel (0) target = $region21
    $region20: #{theory_of_mind_forward.1} parent=1 // pred_region
      %35 = vsyncadd [#allocation5], 0
      %s36 = sshll.u32 %s4, 4
      %s37 = int_to_ptr.hbm [resolvable:$true] %s36
      %s38 = sshll.u32 [#allocation4], 4
      %s39 = int_to_ptr.vmem [resolvable:$true] %s38
      %44 = dma.hbm_to_vmem [thread:$0]  %s37, 1024, %s39, [#allocation5], 128, 128, 8
    $region21: #{theory_of_mind_forward.1} parent=1 // pred_fallthru
      _
    // Predicated region
    $region22: #{theory_of_mind_forward.1} parent=1 // pred_check
      _
    $region23: #{theory_of_mind_forward.1} parent=1 // pred_check_branch
      %46 = sbr.rel (0) target = $region25
    $region24: #{theory_of_mind_forward.1} parent=1 // pred_region
      _
    $region25: #{theory_of_mind_forward.1} parent=1 // pred_fallthru
      _
    // Predicated region
    $region26: #{theory_of_mind_forward.1} parent=1 // pred_check
      _
    $region27: #{theory_of_mind_forward.1} parent=1 // pred_check_branch
      %48 = sbr.rel (0) target = $region29
    $region28: #{theory_of_mind_forward.1} parent=1 // pred_region
      %50 = dma.done [#allocation3], 1024
    $region29: #{theory_of_mind_forward.1} parent=1 // pred_fallthru
      _
    // Predicated region
    $region30: #{theory_of_mind_forward.1} parent=1 // pred_check
      _
    $region31: #{theory_of_mind_forward.1} parent=1 // pred_check_branch
      %52 = sbr.rel (0) target = $region33
    $region32: #{theory_of_mind_forward.1} parent=1 // pred_region
      %54 = dma.done [#allocation5], 1024
    $region33: #{theory_of_mind_forward.1} parent=1 // pred_fallthru
      _
    %v55 = vld [vmem:[%s0] sm:$0xff]
    %v56 = vld [vmem:[#allocation2] sm:$0xff]
    %v57 = vld [vmem:[#allocation2 + $0x8] sm:$0xff]
    %v58 = vld [vmem:[#allocation2 + $0x10] sm:$0xff]
    %v59 = vld [vmem:[#allocation2 + $0x18] sm:$0xff]
    %v60 = vld [vmem:[%s1] sm:$0xff]
    %v61 = vld [vmem:[#allocation2 + $0x20] sm:$0xff]
    %v62 = vld [vmem:[#allocation2 + $0x28] sm:$0xff]
    %v63 = vld [vmem:[#allocation2 + $0x30] sm:$0xff]
    %v64 = vld [vmem:[#allocation2 + $0x38] sm:$0xff]
    %vm65 = vcmask 261120
    %v67 = vsel %vm65, %v60, 0
    %69 = vmatpush.msra.mxu0 0.0
    %70 = vmatpush.msra.mxu0 0.0
    %71 = vmatpush.msra.mxu0 0.0
    %72 = vmatpush.msra.mxu0 0.0
    %73 = vmatpush.msra.mxu0 0.0
    %74 = vmatpush.msra.mxu0 0.0
    %75 = vmatpush.msra.mxu0 0.0
    %76 = vmatpush.msra.mxu0 0.0
    %77 = vmatpush.msra.mxu0 0.0
    %78 = vmatpush.msra.mxu0 0.0
    %79 = vmatpush.msra.mxu0 0.0
    %80 = vmatpush.msra.mxu0 0.0
    %81 = vmatpush.msra.mxu0 %v64
    %82 = vmatpush.msra.mxu0 %v63
    %83 = vmatpush.msra.mxu0 %v62
    %84 = vmatpush.msra.mxu0 %v61
    %85 = vmatmul.f32.gmra.mxu0 %v67
    %v86 = vpop.f32.mrf.mxu0
    %v87 = vadd.f32 0.0, %v86
    %88 = vdwg.mxu0
    %v90 = vsel %vm65, %v55, 0
    %92 = vmatpush.msra.mxu0 0.0
    %93 = vmatpush.msra.mxu0 0.0
    %94 = vmatpush.msra.mxu0 0.0
    %95 = vmatpush.msra.mxu0 0.0
    %96 = vmatpush.msra.mxu0 0.0
    %97 = vmatpush.msra.mxu0 0.0
    %98 = vmatpush.msra.mxu0 0.0
    %99 = vmatpush.msra.mxu0 0.0
    %100 = vmatpush.msra.mxu0 0.0
    %101 = vmatpush.msra.mxu0 0.0
    %102 = vmatpush.msra.mxu0 0.0
    %103 = vmatpush.msra.mxu0 0.0
    %104 = vmatpush.msra.mxu0 %v59
    %105 = vmatpush.msra.mxu0 %v58
    %106 = vmatpush.msra.mxu0 %v57
    %107 = vmatpush.msra.mxu0 %v56
    %108 = vmatmul.f32.gmra.mxu0 %v90
    %v109 = vpop.f32.mrf.mxu0
    %v110 = vadd.f32 %v87, %v109
    %111 = vdwg.mxu0
    %v112 = vld [vmem:[%s3] sm:$0x1]
    %v114 = vperm.slane %v112, 0
    %v116 = vadd.f32 %v110, %v114
    %v117 = vmax.f32 %v116, 0.0
    %v118 = vld [vmem:[#allocation4] sm:$0xff]
    %v119 = vld [vmem:[#allocation4 + $0x8] sm:$0xff]
    %v120 = vld [vmem:[#allocation4 + $0x10] sm:$0xff]
    %v121 = vld [vmem:[#allocation4 + $0x18] sm:$0xff]
    %v122 = vld [vmem:[#allocation4 + $0x20] sm:$0xff]
    %v123 = vld [vmem:[#allocation4 + $0x28] sm:$0xff]
    %v124 = vld [vmem:[#allocation4 + $0x30] sm:$0xff]
    %v125 = vld [vmem:[#allocation4 + $0x38] sm:$0xff]
    %v126 = vld [vmem:[%s5] sm:$0x1]
    %v128 = vperm.slane %v126, 0
    %vm130 = vcmask 523264
    %v132 = vsel %vm130, %v117, 0
    %134 = vmatpush.msra.mxu0 0.0
    %135 = vmatpush.msra.mxu0 0.0
    %136 = vmatpush.msra.mxu0 0.0
    %137 = vmatpush.msra.mxu0 0.0
    %138 = vmatpush.msra.mxu0 0.0
    %139 = vmatpush.msra.mxu0 0.0
    %140 = vmatpush.msra.mxu0 0.0
    %141 = vmatpush.msra.mxu0 0.0
    %142 = vmatpush.msra.mxu0 %v125
    %143 = vmatpush.msra.mxu0 %v124
    %144 = vmatpush.msra.mxu0 %v123
    %145 = vmatpush.msra.mxu0 %v122
    %146 = vmatpush.msra.mxu0 %v121
    %147 = vmatpush.msra.mxu0 %v120
    %148 = vmatpush.msra.mxu0 %v119
    %149 = vmatpush.msra.mxu0 %v118
    %150 = vmatmul.f32.gmra.mxu0 %v132
    %v151 = vpop.f32.mrf.mxu0
    %v152 = vadd.f32 %v128, %v151
    %153 = vdwg.mxu0
    %154 = vst [vmem:[%s6] sm:$0xff] %v152
    %vm155 = vcmask 31744
    %v156 = vsel %vm155, %v152, -inf
    %157 = vmax.xlane.f32.xlu0 %v156
    %v158 = vpop.xlane.xlu0 %157
    %v159 = vsub.f32 %v152, %v158
    %v160 = vmul.f32 %v159, 1.442695
    %v161 = vpow.pop %v160
    %v162 = vsel %vm155, %v161, 0.0
    %163 = vadd.xlane.f32.xlu0 %v162
    %v164 = vpop.xlane.xlu0 %163
    %v165 = vrcp.pop %v164
    %v166 = vmul.f32 %v164, %v165
    %v167 = vsub.f32 1.0, %v166
    %v168 = vmul.f32 %v165, %v167
    %v169 = vadd.f32 %v165, %v168
    %vm170 = vweird.f32 %v164
    %vm171 = vweird.f32 %v165
    %vm172 = vmor %vm170, %vm171
    %v173 = vsel %vm172, %v165, %v169
    %v174 = vand.u32 2147483647, %v164
    %vm175 = vcmp.eq.f32.partialorder %v174, 8.507059e+37
    %v176 = vand.u32 %v164, 2147483648
    %v177 = vor.u32 1.1754944e-38, %v176
    %v178 = vsel %vm175, %v177, %v173
    %v179 = vmul.f32 %v161, %v178
    %180 = vst.msk [vmem:[%s6] sm:$0xff] %vm155, %v179
    %vm181 = vcmask 64544
    %v182 = vsel %vm181, %v152, -inf
    %183 = vmax.xlane.f32.xlu0 %v182
    %v184 = vpop.xlane.xlu0 %183
    %v185 = vsub.f32 %v152, %v184
    %v186 = vmul.f32 %v185, 1.442695
    %v187 = vpow.pop %v186
    %189 = vrot.lane.b32.xlu0 %v187, 124
    %v190 = vpop.permute.xlu0 %189
    %v192 = vsel %vm155, %v190, 0.0
    %193 = vadd.xlane.f32.xlu0 %v192
    %v194 = vpop.xlane.xlu0 %193
    %v195 = vrcp.pop %v194
    %v196 = vmul.f32 %v194, %v195
    %v197 = vsub.f32 1.0, %v196
    %v198 = vmul.f32 %v195, %v197
    %v199 = vadd.f32 %v195, %v198
    %vm200 = vweird.f32 %v194
    %vm201 = vweird.f32 %v195
    %vm202 = vmor %vm200, %vm201
    %v203 = vsel %vm202, %v195, %v199
    %v204 = vand.u32 2147483647, %v194
    %vm205 = vcmp.eq.f32.partialorder %v204, 8.507059e+37
    %v206 = vand.u32 %v194, 2147483648
    %v207 = vor.u32 1.1754944e-38, %v206
    %v208 = vsel %vm205, %v207, %v203
    %v209 = vmul.f32 %v187, %v208
    %210 = vst.msk [vmem:[%s6] sm:$0xff] %vm181, %v209
    // Predicated region
    $region34: #{theory_of_mind_forward.1} parent=1 // pred_check
      _
    $region35: #{theory_of_mind_forward.1} parent=1 // pred_check_branch
      %212 = sbr.rel (0) target = $region37
    $region36: #{theory_of_mind_forward.1} parent=1 // pred_region
      _
    $region37: #{theory_of_mind_forward.1} parent=1 // pred_fallthru
      _
    // Predicated region
    $region38: #{theory_of_mind_forward.1} parent=1 // pred_check
      _
    $region39: #{theory_of_mind_forward.1} parent=1 // pred_check_branch
      %214 = sbr.rel (0) target = $region41
    $region40: #{theory_of_mind_forward.1} parent=1 // pred_region
      _
    $region41: #{theory_of_mind_forward.1} parent=1 // pred_fallthru
      _
    %215 = vsyncpa [#allocation3], 1
    %216 = vsyncpa [#allocation5], 1

</llo_original>
